<compile_context>
chip_gen: v5e
topology: v5e:2x2
jax: 0.10.0
libtpu: 0.0.40
codegen_flags: <defaults>
</compile_context>

<pallas_src>
import functools

import jax
import jax.numpy as jnp
from jax.experimental import pallas as pl
from jax.experimental.pallas import tpu as pltpu


_NEG_LARGE = -1e30  # masks padded skill columns before the softmax


def _round_up(x: int, m: int) -> int:
    return ((x + m - 1) // m) * m


def _skill_selector_kernel(obs_ref, w_ref, b_ref, out_ref):
    """Fused linear skill head + softmax over skills (one batch tile).

    obs_ref : [TB, D]   f32/bf16 (VMEM)  -- batch tile (pipelined)
    w_ref   : [D,  KP]  f32/bf16 (VMEM)  -- resident, single-buffered
    b_ref   : [1,  KP]  f32      (VMEM)  -- padded cols hold -1e30
    out_ref : [TB, KP]  f32      (VMEM)  -- lane-dense (KP % 128 == 0)
    """
    # MXU matmul with f32 accumulation; padded skill columns get ~-1e30 from
    # the bias so they contribute exp(...) == 0 below.
    logits = jnp.dot(obs_ref[...], w_ref[...],
                     preferred_element_type=jnp.float32) + b_ref[...]

    # Numerically-stable softmax over the (padded) skill axis.
    m = jnp.max(logits, axis=-1, keepdims=True)
    e = jnp.exp(logits - m)
    denom = jnp.sum(e, axis=-1, keepdims=True)
    # Exact divide: kernel is DMA-bound so VPU/EUP have slack; approx
    # reciprocal saved nothing and left rows slightly unnormalized.
    out_ref[...] = (e / denom).astype(out_ref.dtype)


@functools.partial(jax.jit, static_argnames=("tb", "use_bf16"))
def skill_selector_forward(
    obs: jax.Array,
    w: jax.Array,
    b: jax.Array,
    *,
    tb: int = 512,
    use_bf16: bool = False,
) -> jax.Array:
    """obs: [B, D], w: [D, K], b: [K] -> skill probabilities [B, K] (f32)."""
    B, D = obs.shape
    K = w.shape[1]

    # Lane-dense skill axis: pad K up to a multiple of 128.
    KP = _round_up(max(K, 1), 128)

    # Batch tile: multiple of 8 sublanes, capped by tb.
    TB = _round_up(max(1, min(tb, B)), 8)
    grid_b = pl.cdiv(B, TB)
    # v7x has 2 TensorCores per chip: prefer >= 2 balanced grid steps for a
    # non-trivial batch so the "parallel" axis can be megacore-sharded.
    if grid_b == 1 and B > 16:
        TB = _round_up(pl.cdiv(B, 2), 8)
        grid_b = pl.cdiv(B, TB)

    in_dtype = jnp.bfloat16 if use_bf16 else jnp.float32
    # Cast BEFORE padding (single wrapper pass).  obs itself is never
    # padded/copied: the partial last batch tile is handled by Pallas store
    # clipping (garbage rows in the tile are computed but never written).
    obs_in = obs if obs.dtype == in_dtype else obs.astype(in_dtype)
    w_in = w if w.dtype == in_dtype else w.astype(in_dtype)
    w_p = jnp.pad(w_in, ((0, 0), (0, KP - K)))
    b_p = jnp.pad(
        b.astype(jnp.float32).reshape(1, K),
        ((0, 0), (0, KP - K)),
        constant_values=_NEG_LARGE,
    )

    # Explicit VMEM budget from the tile sizes (keeps larger TB viable on v7x
    # 64 MiB / v5e's 16 MiB default scoped limit).
    itemsize = 2 if use_bf16 else 4
    vmem_bytes = (
        2 * TB * D * itemsize      # obs tile, double-buffered
        + 2 * TB * KP * 4          # out tile, double-buffered
        + D * KP * itemsize        # W, single-buffered (Buffered(1))
        + KP * 4                   # bias
    )
    vmem_limit = int(min(64 << 20, max(32 << 20, 2 * vmem_bytes)))

    out = pl.pallas_call(
        _skill_selector_kernel,
        out_shape=jax.ShapeDtypeStruct((B, KP), jnp.float32),
        grid=(grid_b,),
        in_specs=[
            # obs tile: pipelined (double-buffered) over batch tiles.
            pl.BlockSpec((TB, D), lambda i: (i, 0)),
            # W / bias: constant index_map -> resident, single-buffered.
            pl.BlockSpec((D, KP), lambda i: (0, 0), pipeline_mode=pl.Buffered(1)),
            pl.BlockSpec((1, KP), lambda i: (0, 0), pipeline_mode=pl.Buffered(1)),
        ],
        out_specs=pl.BlockSpec((TB, KP), lambda i: (i, 0)),
        compiler_params=pltpu.CompilerParams(
            # Embarrassingly parallel over batch tiles -> megacore on v7x.
            dimension_semantics=("parallel",),
            vmem_limit_bytes=vmem_limit,
        ),
    )(obs_in, w_p, b_p)

    # TODO(synk): consumers that accept the lane-dense [B, KP] layout (or a
    # bf16 output) should skip this slice pass; for tiny K the padded f32
    # writeback is the largest remaining HBM stream.
    return out[:, :K]


def skill_selector_reference(obs, w, b):
    logits = jnp.dot(obs, w, precision=jax.lax.Precision.HIGHEST) + b[None, :]
    return jax.nn.softmax(logits, axis=-1)


if __name__ == "__main__":
    # Small shapes consistent with the module's forward contract:
    # batch of observation embeddings -> distribution over K skills.
    B, D, K = 24, 32, 16

    key = jax.random.PRNGKey(0)
    k_obs, k_w, k_b = jax.random.split(key, 3)

    obs = jax.random.normal(k_obs, (B, D), dtype=jnp.float32)
    # Deterministic parameter init (synthetic; no checkpoint load).
    w = jax.random.normal(k_w, (D, K), dtype=jnp.float32) * (1.0 / jnp.sqrt(D))
    b = jax.random.normal(k_b, (K,), dtype=jnp.float32) * 0.01

    ref = skill_selector_reference(obs, w, b)

    # Path 1: tb=8 -> grid=(3,), exact multi-tile pipelined path.
    probs = jax.block_until_ready(skill_selector_forward(obs, w, b, tb=8))
    assert probs.shape == (B, K), f"bad shape {probs.shape}"
    assert jnp.allclose(probs, ref, atol=1e-4, rtol=1e-3), "mismatch vs reference (tb=8)"
    assert jnp.allclose(jnp.sum(probs, axis=-1), 1.0, atol=1e-4), "rows must sum to 1"

    # Path 2: default tb -> TB=16, grid=(2,), exercises the clipped partial
    # last batch tile (no batch padding in the wrapper).
    probs2 = jax.block_until_ready(skill_selector_forward(obs, w, b))
    assert probs2.shape == (B, K), f"bad shape {probs2.shape}"
    assert jnp.allclose(probs2, ref, atol=1e-4, rtol=1e-3), "mismatch vs reference (default tb)"
    assert jnp.allclose(jnp.sum(probs2, axis=-1), 1.0, atol=1e-4), "rows must sum to 1"

    # TODO(synk): the PyTorch class is an ABC with an abstract forward; this
    # implements the canonical linear+softmax skill-selection head (the
    # `identifier` string attribute has no kernel-side equivalent).
    print("KERNEL_OK")
</pallas_src>

<mosaic_0001>
module attributes {stable_mosaic.version = 11 : i64} {
  func.func @_skill_selector_kernel(%arg0: i32, %arg1: memref<8x32xf32, #tpu.memory_space<vmem>>, %arg2: memref<32x128xf32, #tpu.memory_space<vmem>>, %arg3: memref<1x128xf32, #tpu.memory_space<vmem>>, %arg4: memref<8x128xf32, #tpu.memory_space<vmem>>) attributes {dimension_semantics = [#tpu.dimension_semantics<parallel>], iteration_bounds = array<i64: 3>, scalar_prefetch = 0 : i64, scratch_operands = 0 : i64, tpu.core_type = #tpu.core_type<tc>, window_params = [{transform_indices = @transform_0, window_bounds = array<i64: 8, 32>}, {pipeline_mode = #tpu.pipeline_mode<synchronous>, transform_indices = @transform_1, window_bounds = array<i64: 32, 128>}, {pipeline_mode = #tpu.pipeline_mode<synchronous>, transform_indices = @transform_2, window_bounds = array<i64: 1, 128>}, {transform_indices = @transform_3, window_bounds = array<i64: 8, 128>}]} {
    %c0 = arith.constant 0 : index
    %c0_0 = arith.constant 0 : index
    %0 = vector.load %arg1[%c0, %c0_0] : memref<8x32xf32, #tpu.memory_space<vmem>>, vector<8x32xf32>
    %c0_1 = arith.constant 0 : index
    %c0_2 = arith.constant 0 : index
    %1 = vector.load %arg2[%c0_1, %c0_2] : memref<32x128xf32, #tpu.memory_space<vmem>>, vector<32x128xf32>
    %cst = arith.constant dense<0.000000e+00> : vector<8x128xf32>
    %2 = tpu.matmul %0, %1, %cst {dimension_numbers = #tpu.dot_dimension_numbers<[1], [0], [0], [1], [0, 0, 1, 1], [], []>} : vector<8x32xf32>, vector<32x128xf32>, vector<8x128xf32> -> vector<8x128xf32>
    %c0_3 = arith.constant 0 : index
    %c0_4 = arith.constant 0 : index
    %3 = vector.load %arg3[%c0_3, %c0_4] : memref<1x128xf32, #tpu.memory_space<vmem>>, vector<1x128xf32>
    %4 = vector.broadcast %3 : vector<1x128xf32> to vector<8x128xf32>
    %5 = arith.addf %2, %4 : vector<8x128xf32>
    %cst_5 = arith.constant dense<0xFF800000> : vector<8xf32>
    %6 = vector.multi_reduction <maximumf>, %5, %cst_5 [1] : vector<8x128xf32> to vector<8xf32>
    %7 = vector.shape_cast %6 : vector<8xf32> to vector<8x1xf32>
    %8 = vector.broadcast %7 : vector<8x1xf32> to vector<8x128xf32>
    %9 = arith.subf %5, %8 : vector<8x128xf32>
    %10 = math.exp %9 : vector<8x128xf32>
    %cst_6 = arith.constant dense<0.000000e+00> : vector<8xf32>
    %11 = vector.multi_reduction <add>, %10, %cst_6 [1] : vector<8x128xf32> to vector<8xf32>
    %12 = vector.shape_cast %11 : vector<8xf32> to vector<8x1xf32>
    %13 = vector.broadcast %12 : vector<8x1xf32> to vector<8x128xf32>
    %14 = arith.divf %10, %13 : vector<8x128xf32>
    %c0_7 = arith.constant 0 : index
    %c0_8 = arith.constant 0 : index
    %15 = vector.load %arg4[%c0_7, %c0_8] : memref<8x128xf32, #tpu.memory_space<vmem>>, vector<8x128xf32>
    tpu.vector_store %arg4[%c0_7, %c0_8], %14 {strides = array<i32>} : memref<8x128xf32, #tpu.memory_space<vmem>>, vector<8x128xf32>,
    return
  }
  func.func @transform_0(%arg0: i32) -> (i32, i32) {
    %c0_i32 = arith.constant 0 : i32
    %c0_i32_0 = arith.constant 0 : i32
    return %arg0, %c0_i32 : i32, i32
  }
  func.func @transform_1(%arg0: i32) -> (i32, i32) {
    %c0_i32 = arith.constant 0 : i32
    %c0_i32_0 = arith.constant 0 : i32
    %c0_i32_1 = arith.constant 0 : i32
    return %c0_i32, %c0_i32_0 : i32, i32
  }
  func.func @transform_2(%arg0: i32) -> (i32, i32) {
    %c0_i32 = arith.constant 0 : i32
    %c0_i32_0 = arith.constant 0 : i32
    %c0_i32_1 = arith.constant 0 : i32
    return %c0_i32, %c0_i32_0 : i32, i32
  }
  func.func @transform_3(%arg0: i32) -> (i32, i32) {
    %c0_i32 = arith.constant 0 : i32
    %c0_i32_0 = arith.constant 0 : i32
    return %arg0, %c0_i32 : i32, i32
  }
}

</mosaic_0001>

<llo_original>
// kernel: skill_selector_forward.1
$region0: #{skill_selector_forward.1}
  #allocation0 [shape = 'u32[]', space=smem, size = 0x4, offset = 0x4, fixed_abs, tag = 'smem constant byte address 0x4 - core index']
  #allocation1 [shape = 'u32[72,128]{1,0:T(1,128)}', space=vmem, size = 0x9000, scoped, tag = 'internal scratch']
  %s0 = inlined_call_operand.vmem [shape: f32[24,32], index: 0, kind: input, shape index: {}]
  %s1 = inlined_call_operand.vmem [shape: f32[32,128], index: 1, kind: input, shape index: {}]
  %s2 = inlined_call_operand.vmem [shape: f32[1,128], index: 2, kind: input, shape index: {}]
  %s3 = inlined_call_operand.vmem [shape: f32[24,128], index: 3, kind: output, shape index: {}]
  %s4 = sld [smem:[#allocation0]]
  $region45: #{skill_selector_forward.1} parent=0
    _
  %s6 = ssub.s32 1, %s4
  %s7 = scalar_select 0, %s6, %s4
  loop: start=0, step=1, limit=5
  $region2: #{skill_selector_forward.1} parent=0 // loop_pre_header
    _
  $region3: #{skill_selector_forward.1} parent=0 // loop_header
    %s9 = sphi 0, %s13
    %p10 = scmp.ge.s32.totalorder %s9, 5
    %s19 = sphi 0, %s21
    %s22 = sphi 0, %s19
    %s23 = sphi 0, %s22
    %s39 = sphi 0, %s23
    %s43 = sphi 0, %s43
    %s45 = sphi 0, %s43
    %s46 = sphi 0, %s45
    %s60 = sphi 0, %s46
    %s64 = sphi 0, %s64
    %s66 = sphi 0, %s64
    %s67 = sphi 0, %s66
    %s81 = sphi 0, %s67
    %s87 = sphi 0, %s89
    %s90 = sphi 0, %s87
    %s91 = sphi 0, %s90
    %s107 = sphi 0, %s91
  $region4: #{skill_selector_forward.1} parent=0 // loop_header_branch
    %12 = sbr.rel (%p10) target = $region8
  $region5: #{skill_selector_forward.1} parent=0 // loop_body
    %s14 = ssub.s32 %s9, 1
    %s15 = ssub.s32 %s9, 2
    %s16 = sadd.s32 %s9, 1
    %s17 = ssub.s32 %s9, %s16
    %p18 = scmp.eq.s32.totalorder %s17, 0
    %s20 = sadd.s32 %s19, 1
    %s21 = scalar_select %p18, %s19, %s20
    %p24 = pneg %p18
    %p25 = scmp.eq.s32.totalorder %s9, 2
    %p26 = por %p24, %p25
    %p27 = scmp.ne.s32.totalorder %s19, %s22
    %p28 = scmp.eq.s32.totalorder %s9, 0
    %p29 = por %p27, %p28
    %p30 = scmp.ne.s32.totalorder %s19, %s22
    %p31 = scmp.eq.s32.totalorder %s14, 2
    %p32 = por %p30, %p31
    %p33 = scmp.ne.s32.totalorder %s22, %s23
    %p34 = scmp.eq.s32.totalorder %s14, 0
    %p35 = por %p33, %p34
    %p36 = scmp.ne.s32.totalorder %s22, %s23
    %p37 = scmp.eq.s32.totalorder %s15, 2
    %p38 = por %p36, %p37
    %p40 = scmp.ne.s32.totalorder %s23, %s39
    %p41 = scmp.eq.s32.totalorder %s15, 0
    %p42 = por %p40, %p41
    %s44 = sadd.s32 %s43, 1
    %p47 = scmp.eq.s32.totalorder %s9, 2
    %p48 = scmp.ne.s32.totalorder %s43, %s45
    %p49 = scmp.eq.s32.totalorder %s9, 0
    %p50 = por %p48, %p49
    %p51 = scmp.ne.s32.totalorder %s43, %s45
    %p52 = scmp.eq.s32.totalorder %s14, 2
    %p53 = por %p51, %p52
    %p54 = scmp.ne.s32.totalorder %s45, %s46
    %p55 = scmp.eq.s32.totalorder %s14, 0
    %p56 = por %p54, %p55
    %p57 = scmp.ne.s32.totalorder %s45, %s46
    %p58 = scmp.eq.s32.totalorder %s15, 2
    %p59 = por %p57, %p58
    %p61 = scmp.ne.s32.totalorder %s46, %s60
    %p62 = scmp.eq.s32.totalorder %s15, 0
    %p63 = por %p61, %p62
    %s65 = sadd.s32 %s64, 1
    %p68 = scmp.eq.s32.totalorder %s9, 2
    %p69 = scmp.ne.s32.totalorder %s64, %s66
    %p70 = scmp.eq.s32.totalorder %s9, 0
    %p71 = por %p69, %p70
    %p72 = scmp.ne.s32.totalorder %s64, %s66
    %p73 = scmp.eq.s32.totalorder %s14, 2
    %p74 = por %p72, %p73
    %p75 = scmp.ne.s32.totalorder %s66, %s67
    %p76 = scmp.eq.s32.totalorder %s14, 0
    %p77 = por %p75, %p76
    %p78 = scmp.ne.s32.totalorder %s66, %s67
    %p79 = scmp.eq.s32.totalorder %s15, 2
    %p80 = por %p78, %p79
    %p82 = scmp.ne.s32.totalorder %s67, %s81
    %p83 = scmp.eq.s32.totalorder %s15, 0
    %p84 = por %p82, %p83
    %s85 = ssub.s32 %s9, %s16
    %p86 = scmp.eq.s32.totalorder %s85, 0
    %s88 = sadd.s32 %s87, 1
    %s89 = scalar_select %p86, %s87, %s88
    %p92 = pneg %p86
    %p93 = scmp.eq.s32.totalorder %s9, 2
    %p94 = por %p92, %p93
    %p95 = scmp.ne.s32.totalorder %s87, %s90
    %p96 = scmp.eq.s32.totalorder %s9, 0
    %p97 = por %p95, %p96
    %p98 = scmp.ne.s32.totalorder %s87, %s90
    %p99 = scmp.eq.s32.totalorder %s14, 2
    %p100 = por %p98, %p99
    %p101 = scmp.ne.s32.totalorder %s90, %s91
    %p102 = scmp.eq.s32.totalorder %s14, 0
    %p103 = por %p101, %p102
    %p104 = scmp.ne.s32.totalorder %s90, %s91
    %p105 = scmp.eq.s32.totalorder %s15, 2
    %p106 = por %p104, %p105
    %p108 = scmp.ne.s32.totalorder %s91, %s107
    %p109 = scmp.eq.s32.totalorder %s15, 0
    %p110 = por %p108, %p109
    %p111 = scmp.le.s32.totalorder 1, %s9
    %p112 = scmp.lt.s32.totalorder %s9, 4
    %p113 = pnand %p111, %p112
    %p114 = pneg %p113
    // Predicated region
    $region9: #{skill_selector_forward.1} parent=5 // pred_check
      _
    $region10: #{skill_selector_forward.1} parent=5 // pred_check_branch
      %116 = sbr.rel (%p113) target = $region12
    $region11: #{skill_selector_forward.1} parent=5 // pred_region
      %s117 = ssub.s32 %s9, 1
      // Predicated region
      $region13: #{skill_selector_forward.1} parent=11 // pred_check
        %p118 = pneg %p56
      $region14: #{skill_selector_forward.1} parent=11 // pred_check_branch
        %120 = sbr.rel (%p118) target = $region16
      $region15: #{skill_selector_forward.1} parent=11 // pred_region
        _
      $region16: #{skill_selector_forward.1} parent=11 // pred_fallthru
        _
      // Predicated region
      $region17: #{skill_selector_forward.1} parent=11 // pred_check
        %p121 = pneg %p77
      $region18: #{skill_selector_forward.1} parent=11 // pred_check_branch
        %123 = sbr.rel (%p121) target = $region20
      $region19: #{skill_selector_forward.1} parent=11 // pred_region
        _
      $region20: #{skill_selector_forward.1} parent=11 // pred_fallthru
        _
    $region12: #{skill_selector_forward.1} parent=5 // pred_fallthru
      _
    %p124 = scmp.lt.s32.totalorder %s9, 3
    // Predicated region
    $region21: #{skill_selector_forward.1} parent=5 // pred_check
      %p125 = pneg %p124
    $region22: #{skill_selector_forward.1} parent=5 // pred_check_branch
      %127 = sbr.rel (%p125) target = $region24
    $region23: #{skill_selector_forward.1} parent=5 // pred_region
      // Predicated region
      $region25: #{skill_selector_forward.1} parent=23 // pred_check
        %p128 = pneg %p29
      $region26: #{skill_selector_forward.1} parent=23 // pred_check_branch
        %130 = sbr.rel (%p128) target = $region28
      $region27: #{skill_selector_forward.1} parent=23 // pred_region
        %p131 = scmp.lt.s32.totalorder %s9, 2
        %s132 = scalar_select %p131, %s9, 2
        %s133 = smul.addr %s132, 8
        %s134 = scalar_lea.vmem %s0, %s133
      $region28: #{skill_selector_forward.1} parent=23 // pred_fallthru
        _
    $region24: #{skill_selector_forward.1} parent=5 // pred_fallthru
      _
    %p135 = scmp.le.s32.totalorder 1, %s9
    %p136 = scmp.lt.s32.totalorder %s9, 4
    %p137 = pnand %p135, %p136
    %p138 = pneg %p137
    // Predicated region
    $region29: #{skill_selector_forward.1} parent=5 // pred_check
      _
    $region30: #{skill_selector_forward.1} parent=5 // pred_check_branch
      %140 = sbr.rel (%p137) target = $region32
    $region31: #{skill_selector_forward.1} parent=5 // pred_region
      %s141 = ssub.s32 %s9, 1
      %p142 = scmp.lt.s32.totalorder %s14, 2
      %s143 = scalar_select %p142, %s14, 2
      %s144 = smul.addr %s143, 8
      %s145 = scalar_lea.vmem %s0, %s144
      %p146 = pneg %p35
      %p147 = pneg %p32
      %p148 = pneg %p56
      %p149 = pneg %p53
      %p150 = pneg %p77
      %p151 = pneg %p74
      %p152 = pneg %p103
      %p153 = pneg %p100
      %p154 = scmp.lt.s32.totalorder %s14, 2
      %s155 = scalar_select %p154, %s14, 2
      %s156 = smul.addr %s155, 8
      %s157 = scalar_lea.vmem %s3, %s156
      %p158 = scmp.lt.s32.totalorder %s14, 2
      %s159 = scalar_select %p158, %s14, 2
      %s160 = smul.addr %s159, 8
      %s161 = scalar_lea.vmem %s0, %s160
      %p162 = scmp.lt.s32.totalorder %s14, 2
      %s163 = scalar_select %p162, %s14, 2
      %s164 = smul.addr %s163, 8
      %s165 = scalar_lea.vmem %s3, %s164
      %v166 = vld [vmem:[%s161] sm:$0xff]
      %v167 = vld [vmem:[%s1] sm:$0xff]
      %v168 = vld [vmem:[%s1 + $0x8] sm:$0xff]
      %v169 = vld [vmem:[%s1 + $0x10] sm:$0xff]
      %v170 = vld [vmem:[%s1 + $0x18] sm:$0xff]
      %v171 = vld [vmem:[%s2] sm:$0x1]
      %v173 = vperm.slane %v171, 0
      %vm175 = vcmask 261120
      %v177 = vsel %vm175, %v166, 0
      %179 = vmatpush.msra.mxu0 0.0
      %180 = vmatpush.msra.mxu0 0.0
      %181 = vmatpush.msra.mxu0 0.0
      %182 = vmatpush.msra.mxu0 0.0
      %183 = vmatpush.msra.mxu0 0.0
      %184 = vmatpush.msra.mxu0 0.0
      %185 = vmatpush.msra.mxu0 0.0
      %186 = vmatpush.msra.mxu0 0.0
      %187 = vmatpush.msra.mxu0 0.0
      %188 = vmatpush.msra.mxu0 0.0
      %189 = vmatpush.msra.mxu0 0.0
      %190 = vmatpush.msra.mxu0 0.0
      %191 = vmatpush.msra.mxu0 %v170
      %192 = vmatpush.msra.mxu0 %v169
      %193 = vmatpush.msra.mxu0 %v168
      %194 = vmatpush.msra.mxu0 %v167
      %195 = vmatmul.f32.gmra.mxu0 %v177
      %v196 = vpop.f32.mrf.mxu0
      %v197 = vadd.f32 %v173, %v196
      %198 = vdwg.mxu0
      %199 = vmax.xlane.f32.xlu0 %v197
      %v200 = vpop.xlane.xlu0 %199
      %v201 = vsub.f32 %v197, %v200
      %v202 = vmul.f32 %v201, 1.442695
      %v203 = vpow.pop %v202
      %204 = vadd.xlane.f32.xlu0 %v203
      %v205 = vpop.xlane.xlu0 %204
      %v206 = vrcp.pop %v205
      %v207 = vmul.f32 %v205, %v206
      %v208 = vsub.f32 1.0, %v207
      %v209 = vmul.f32 %v206, %v208
      %v210 = vadd.f32 %v206, %v209
      %vm211 = vweird.f32 %v205
      %vm212 = vweird.f32 %v206
      %vm213 = vmor %vm211, %vm212
      %v214 = vsel %vm213, %v206, %v210
      %v215 = vand.u32 2147483647, %v205
      %vm216 = vcmp.eq.f32.partialorder %v215, 8.507059e+37
      %v217 = vand.u32 %v205, 2147483648
      %v218 = vor.u32 1.1754944e-38, %v217
      %v219 = vsel %vm216, %v218, %v214
      %v220 = vmul.f32 %v203, %v219
      %221 = vst [vmem:[%s165] sm:$0xff] %v220
      %p222 = scmp.lt.s32.totalorder %s14, 2
      %s223 = scalar_select %p222, %s14, 2
      %s224 = smul.addr %s223, 8
      %s225 = scalar_lea.vmem %s3, %s224
      // Predicated region
      $region33: #{skill_selector_forward.1} parent=31 // pred_check
        %p226 = pneg %p100
      $region34: #{skill_selector_forward.1} parent=31 // pred_check_branch
        %228 = sbr.rel (%p226) target = $region36
      $region35: #{skill_selector_forward.1} parent=31 // pred_region
        _
      $region36: #{skill_selector_forward.1} parent=31 // pred_fallthru
        _
    $region32: #{skill_selector_forward.1} parent=5 // pred_fallthru
      _
    %p229 = scmp.le.s32.totalorder 2, %s9
    // Predicated region
    $region37: #{skill_selector_forward.1} parent=5 // pred_check
      %p230 = pneg %p229
    $region38: #{skill_selector_forward.1} parent=5 // pred_check_branch
      %232 = sbr.rel (%p230) target = $region40
    $region39: #{skill_selector_forward.1} parent=5 // pred_region
      %s233 = ssub.s32 %s9, 2
      // Predicated region
      $region41: #{skill_selector_forward.1} parent=39 // pred_check
        %p234 = pneg %p106
      $region42: #{skill_selector_forward.1} parent=39 // pred_check_branch
        %236 = sbr.rel (%p234) target = $region44
      $region43: #{skill_selector_forward.1} parent=39 // pred_region
        %p237 = scmp.lt.s32.totalorder %s15, 2
        %s238 = scalar_select %p237, %s15, 2
        %s239 = smul.addr %s238, 8
        %s240 = scalar_lea.vmem %s3, %s239
      $region44: #{skill_selector_forward.1} parent=39 // pred_fallthru
        _
    $region40: #{skill_selector_forward.1} parent=5 // pred_fallthru
      _
  $region6: #{skill_selector_forward.1} parent=0 // loop_footer
    %s13 = sadd.s32 1, %s9
  $region7: #{skill_selector_forward.1} parent=0 // loop_footer_branch
    %8 = sbr.rel target = $region3
  $region8: #{skill_selector_forward.1} parent=0 // loop_exit
    _

</llo_original>
